<compile_context>
chip_gen: v7x
topology: tpu7x:2x2x1
jax: 0.10.0
libtpu: 0.0.40
codegen_flags: <defaults>
</compile_context>

<pallas_src>
import jax
import jax.numpy as jnp
from jax import lax
from jax.experimental import pallas as pl
from jax.experimental.pallas import tpu as pltpu


def _round_up(x: int, m: int) -> int:
    return (x + m - 1) // m * m


# ---------------------------------------------------------------------------
# Exact-form GELU (PyTorch nn.GELU default is erf-based, not the tanh approx).
# erf via Abramowitz & Stegun 7.1.26 (max abs err ~1.5e-7) — only abs / exp /
# mul / add / where / reciprocal, all of which lower cleanly in Mosaic.
# ---------------------------------------------------------------------------
def _erf_approx(x, *, eup_recip=False):
    p = 0.3275911
    a1, a2, a3, a4, a5 = 0.254829592, -0.284496736, 1.421413741, -1.453152027, 1.061405429
    ax = jnp.abs(x)
    denom = 1.0 + p * ax
    # Inside the kernel, route the divide to the otherwise-idle EUP slot.
    t = pl.reciprocal(denom, approx=True) if eup_recip else 1.0 / denom
    poly = ((((a5 * t + a4) * t + a3) * t + a2) * t + a1) * t
    y = 1.0 - poly * jnp.exp(-(ax * ax))
    return jnp.where(x >= 0, y, -y)


def _gelu_exact(x, *, eup_recip=False):
    return 0.5 * x * (1.0 + _erf_approx(x * 0.7071067811865476, eup_recip=eup_recip))


# ---------------------------------------------------------------------------
# Fused kernel, one batch tile of TB rows per grid step:
#   x: (TB*S, D_pad) bf16  @  w: (D_pad, H_pad) bf16  ->  f32, + bias, GELU
#   mean over S (sublane-aligned split, S % 8 == 0)   ->  e: (TB, H_pad) f32
#   -cdist epilogue against resident bf16 refs + precomputed f32 |r|^2
#   ->  out: (TB, R_pad) f32  (lane-dense, unmasked stores)
# ---------------------------------------------------------------------------
def fused_embed_cdist_kernel(x_ref, w_ref, b_ref, refs_ref, r2_ref, out_ref):
    tb_s, _ = x_ref.shape
    h_pad = w_ref.shape[1]
    tb = out_ref.shape[0]
    s = tb_s // tb

    # Encoder: Linear (MXU, bf16 in / f32 acc) + bias + exact GELU.
    h = jnp.dot(x_ref[...], w_ref[...], preferred_element_type=jnp.float32)  # (TB*S, H_pad) f32
    h = _gelu_exact(h + b_ref[...], eup_recip=True)

    # average_hidden: mean over the sequence axis.
    # TODO(synk): for S % 8 != 0 restructure as a strided/chunked sum to avoid
    #             a VMEM relayout copy of the f32 intermediate.
    e = jnp.mean(h.reshape(tb, s, h_pad), axis=1)                            # (TB, H_pad) f32

    # similarities = -cdist(e, refs):  d^2 = |e|^2 + |r|^2 - 2 e.r
    e2 = jnp.sum(e * e, axis=-1, keepdims=True)                              # (TB, 1)      f32
    cross = lax.dot_general(                                                 # contract last axes: no transpose
        e.astype(jnp.bfloat16), refs_ref[...],
        dimension_numbers=(((1,), (1,)), ((), ())),
        preferred_element_type=jnp.float32)                                  # (TB, R_pad)  f32
    d2 = jnp.maximum(e2 + r2_ref[...] - 2.0 * cross, 0.0)
    out_ref[...] = -jnp.sqrt(d2)


# ---------------------------------------------------------------------------
# Tile sizing from an explicit VMEM budget (v7x: 64 MiB, v5e/v6e: 128 MiB).
# ---------------------------------------------------------------------------
def _vmem_budget_bytes() -> int:
    try:
        info = pltpu.get_tpu_info()
        cap = int(getattr(info, "vmem_capacity_bytes", 64 * 1024 * 1024))
    except Exception:
        cap = 64 * 1024 * 1024
    # ~75% of physical VMEM, capped at 96 MiB (v5e/v6e) -> ~48 MiB on v7x.
    return min((cap // 4) * 3, 96 * 1024 * 1024)


def _pick_tb(B, S, d_pad, h_pad, r_pad, vmem_budget):
    # Grid-invariant resident operands (default pipeline double-buffers them).
    fixed = 2 * (d_pad * h_pad * 2 + h_pad * 4 + r_pad * h_pad * 2 + r_pad * 4)
    # Per-batch-row cost: x block (bf16, x2 buffers), (S, H_pad) f32 GELU
    # intermediate, (1, H_pad) f32 mean row, out block (f32, x2 buffers).
    per_row = 2 * (S * d_pad * 2) + S * h_pad * 4 + h_pad * 4 + 2 * (r_pad * 4)
    avail = max(vmem_budget - fixed, 8 * per_row)
    tb = max(8, min(avail // per_row, 1024) // 8 * 8)   # cap keeps grid-level parallelism
    return int(min(tb, _round_up(B, 8)))


# ---------------------------------------------------------------------------
# Full model forward (matches TorchEmbeddingModel.forward)
# ---------------------------------------------------------------------------
def embedding_model_forward(x, params):
    w = params["w"]                        # (D, H) f32
    b = params["b"]                        # (1, H) f32
    refs = params["reference_embeddings"]  # (R, H) f32

    B, S, D = x.shape
    H = w.shape[1]
    R = refs.shape[0]

    d_pad = _round_up(D, 128)
    h_pad = _round_up(H, 128)
    r_pad = _round_up(max(R, 1), 128)

    vmem_budget = _vmem_budget_bytes()
    tb = _pick_tb(B, S, d_pad, h_pad, r_pad, vmem_budget)
    b_pad = _round_up(B, tb)

    # Activations: flatten to 2-D + cast to bf16 (halves the dominant HBM
    # stream); zero-pad only when actually needed.  Zero-padding is inert:
    # padded D columns hit zero w rows, padded batch rows are sliced off.
    x2d = x.reshape(B * S, D).astype(jnp.bfloat16)
    if (b_pad > B) or (d_pad > D):
        x2d = jnp.pad(x2d, ((0, (b_pad - B) * S), (0, d_pad - D)))

    # Parameters: pad/cast once.  GELU(0) = 0, so padded H columns of the
    # embedding are exactly 0 and do not perturb the distances.
    # (In a real deployment these are pre-padded/pre-cast outside the hot path.)
    w_p = jnp.zeros((d_pad, h_pad), jnp.bfloat16).at[:D, :H].set(w.astype(jnp.bfloat16))
    b_p = jnp.zeros((1, h_pad), jnp.float32).at[:, :H].set(b.astype(jnp.float32))
    refs_bf = jnp.zeros((r_pad, h_pad), jnp.bfloat16).at[:R, :H].set(refs.astype(jnp.bfloat16))
    r2 = jnp.sum(refs.astype(jnp.float32) ** 2, axis=-1)                 # hoisted row norms (f32)
    r2_p = jnp.zeros((1, r_pad), jnp.float32).at[0, :R].set(r2)

    flops = 2 * b_pad * S * d_pad * h_pad + 2 * b_pad * r_pad * h_pad
    bytes_accessed = (x2d.size * 2 + w_p.size * 2 + refs_bf.size * 2
                      + h_pad * 4 + r_pad * 4 + b_pad * r_pad * 4)

    out = pl.pallas_call(
        fused_embed_cdist_kernel,
        out_shape=jax.ShapeDtypeStruct((b_pad, r_pad), jnp.float32),
        grid=(b_pad // tb,),
        in_specs=[
            pl.BlockSpec((tb * S, d_pad), lambda i: (i, 0)),   # activations (bf16), batch-tiled
            pl.BlockSpec((d_pad, h_pad), lambda i: (0, 0)),    # weight (bf16), resident
            pl.BlockSpec((1, h_pad), lambda i: (0, 0)),        # bias (f32), resident
            pl.BlockSpec((r_pad, h_pad), lambda i: (0, 0)),    # references (bf16), resident
            pl.BlockSpec((1, r_pad), lambda i: (0, 0)),        # |refs|^2 (f32), resident
        ],
        out_specs=pl.BlockSpec((tb, r_pad), lambda i: (i, 0)),  # lane-dense output tile
        compiler_params=pltpu.CompilerParams(
            dimension_semantics=("parallel",),                  # shard batch tiles across TCs
            vmem_limit_bytes=int(vmem_budget),
        ),
        cost_estimate=pl.CostEstimate(
            flops=int(flops),
            transcendentals=int(2 * b_pad * S * h_pad),
            bytes_accessed=int(bytes_accessed),
        ),
    )(x2d, w_p, b_p, refs_bf, r2_p)

    return out[:B, :R]


# ---------------------------------------------------------------------------
# Pure-JAX reference (same bf16 matmul inputs / f32 accumulation) for checking.
# ---------------------------------------------------------------------------
def _reference_forward(x, params):
    w = params["w"].astype(jnp.bfloat16)
    b = params["b"].astype(jnp.float32)
    refs = params["reference_embeddings"].astype(jnp.float32)
    h = jnp.einsum("bsd,dh->bsh", x.astype(jnp.bfloat16), w,
                   preferred_element_type=jnp.float32)
    h = _gelu_exact(h + b[None])
    e = jnp.mean(h, axis=1)
    cross = jnp.dot(e.astype(jnp.bfloat16), refs.astype(jnp.bfloat16).T,
                    preferred_element_type=jnp.float32)
    d2 = (jnp.sum(e * e, axis=-1, keepdims=True)
          + jnp.sum(refs * refs, axis=-1)[None, :] - 2.0 * cross)
    return -jnp.sqrt(jnp.maximum(d2, 0.0))


def init_params(key, d_in, hidden, num_refs):
    k1, k2, k3 = jax.random.split(key, 3)
    w = jax.random.normal(k1, (d_in, hidden), jnp.float32) * (1.0 / jnp.sqrt(d_in))
    b = jax.random.normal(k2, (1, hidden), jnp.float32) * 0.01
    # PyTorch buffer starts empty (zeros(0, H)); populate deterministic
    # references (as update_references() would) so forward() is non-trivial.
    refs = jax.random.normal(k3, (num_refs, hidden), jnp.float32)
    return {"w": w, "b": b, "reference_embeddings": refs}


if __name__ == "__main__":
    B, S, D_IN, HIDDEN, NUM_REFS = 2, 8, 32, 32, 4

    key = jax.random.PRNGKey(0)
    k_x, k_p = jax.random.split(key)
    x = jax.random.normal(k_x, (B, S, D_IN), jnp.float32)
    params = init_params(k_p, D_IN, HIDDEN, NUM_REFS)

    sims = embedding_model_forward(x, params)
    sims = jax.block_until_ready(sims)

    assert sims.shape == (B, NUM_REFS), sims.shape
    assert bool(jnp.all(jnp.isfinite(sims)))

    ref = _reference_forward(x, params)
    assert jnp.allclose(sims, ref, rtol=2e-2, atol=2e-2), (sims, ref)

    print("KERNEL_OK")
</pallas_src>

<mosaic_0001>
module attributes {stable_mosaic.version = 11 : i64} {
  func.func @fused_embed_cdist_kernel(%arg0: i32, %arg1: memref<64x128xbf16, #tpu.memory_space<vmem>>, %arg2: memref<128x128xbf16, #tpu.memory_space<vmem>>, %arg3: memref<1x128xf32, #tpu.memory_space<vmem>>, %arg4: memref<128x128xbf16, #tpu.memory_space<vmem>>, %arg5: memref<1x128xf32, #tpu.memory_space<vmem>>, %arg6: memref<8x128xf32, #tpu.memory_space<vmem>>) attributes {dimension_semantics = [#tpu.dimension_semantics<parallel>], iteration_bounds = array<i64: 1>, scalar_prefetch = 0 : i64, scratch_operands = 0 : i64, tpu.core_type = #tpu.core_type<tc>, window_params = [{transform_indices = @transform_0, window_bounds = array<i64: 64, 128>}, {pipeline_mode = #tpu.pipeline_mode<synchronous>, transform_indices = @transform_1, window_bounds = array<i64: 128, 128>}, {pipeline_mode = #tpu.pipeline_mode<synchronous>, transform_indices = @transform_2, window_bounds = array<i64: 1, 128>}, {pipeline_mode = #tpu.pipeline_mode<synchronous>, transform_indices = @transform_3, window_bounds = array<i64: 128, 128>}, {pipeline_mode = #tpu.pipeline_mode<synchronous>, transform_indices = @transform_4, window_bounds = array<i64: 1, 128>}, {transform_indices = @transform_5, window_bounds = array<i64: 8, 128>}]} {
    %c0 = arith.constant 0 : index
    %c0_0 = arith.constant 0 : index
    %0 = vector.load %arg1[%c0, %c0_0] : memref<64x128xbf16, #tpu.memory_space<vmem>>, vector<64x128xbf16>
    %c0_1 = arith.constant 0 : index
    %c0_2 = arith.constant 0 : index
    %1 = vector.load %arg2[%c0_1, %c0_2] : memref<128x128xbf16, #tpu.memory_space<vmem>>, vector<128x128xbf16>
    %cst = arith.constant dense<0.000000e+00> : vector<64x128xf32>
    %2 = tpu.matmul %0, %1, %cst {dimension_numbers = #tpu.dot_dimension_numbers<[1], [0], [0], [1], [0, 0, 1, 1], [], []>} : vector<64x128xbf16>, vector<128x128xbf16>, vector<64x128xf32> -> vector<64x128xf32>
    %c0_3 = arith.constant 0 : index
    %c0_4 = arith.constant 0 : index
    %3 = vector.load %arg3[%c0_3, %c0_4] : memref<1x128xf32, #tpu.memory_space<vmem>>, vector<1x128xf32>
    %4 = vector.broadcast %3 : vector<1x128xf32> to vector<64x128xf32>
    %5 = arith.addf %2, %4 : vector<64x128xf32>
    %cst_5 = arith.constant 5.000000e-01 : f32
    %6 = vector.broadcast %cst_5 : f32 to vector<64x128xf32>
    %7 = arith.mulf %6, %5 : vector<64x128xf32>
    %cst_6 = arith.constant 0.707106769 : f32
    %8 = vector.broadcast %cst_6 : f32 to vector<64x128xf32>
    %9 = arith.mulf %5, %8 : vector<64x128xf32>
    %10 = math.absf %9 : vector<64x128xf32>
    %cst_7 = arith.constant 0.327591091 : f32
    %11 = vector.broadcast %cst_7 : f32 to vector<64x128xf32>
    %12 = arith.mulf %11, %10 : vector<64x128xf32>
    %cst_8 = arith.constant 1.000000e+00 : f32
    %13 = vector.broadcast %cst_8 : f32 to vector<64x128xf32>
    %14 = arith.addf %13, %12 : vector<64x128xf32>
    %15 = tpu.reciprocal %14 {approx = true} : vector<64x128xf32> -> vector<64x128xf32>
    %cst_9 = arith.constant 1.06140542 : f32
    %16 = vector.broadcast %cst_9 : f32 to vector<64x128xf32>
    %17 = arith.mulf %16, %15 : vector<64x128xf32>
    %cst_10 = arith.constant -1.45315206 : f32
    %18 = vector.broadcast %cst_10 : f32 to vector<64x128xf32>
    %19 = arith.addf %17, %18 : vector<64x128xf32>
    %20 = arith.mulf %19, %15 : vector<64x128xf32>
    %cst_11 = arith.constant 1.42141378 : f32
    %21 = vector.broadcast %cst_11 : f32 to vector<64x128xf32>
    %22 = arith.addf %20, %21 : vector<64x128xf32>
    %23 = arith.mulf %22, %15 : vector<64x128xf32>
    %cst_12 = arith.constant -0.284496725 : f32
    %24 = vector.broadcast %cst_12 : f32 to vector<64x128xf32>
    %25 = arith.addf %23, %24 : vector<64x128xf32>
    %26 = arith.mulf %25, %15 : vector<64x128xf32>
    %cst_13 = arith.constant 0.254829586 : f32
    %27 = vector.broadcast %cst_13 : f32 to vector<64x128xf32>
    %28 = arith.addf %26, %27 : vector<64x128xf32>
    %29 = arith.mulf %28, %15 : vector<64x128xf32>
    %30 = arith.mulf %10, %10 : vector<64x128xf32>
    %cst_14 = arith.constant 0.000000e+00 : f32
    %31 = vector.broadcast %cst_14 : f32 to vector<64x128xf32>
    %32 = arith.subf %31, %30 : vector<64x128xf32>
    %33 = math.exp %32 : vector<64x128xf32>
    %34 = arith.mulf %29, %33 : vector<64x128xf32>
    %cst_15 = arith.constant 1.000000e+00 : f32
    %35 = vector.broadcast %cst_15 : f32 to vector<64x128xf32>
    %36 = arith.subf %35, %34 : vector<64x128xf32>
    %cst_16 = arith.constant 0.000000e+00 : f32
    %37 = vector.broadcast %cst_16 : f32 to vector<64x128xf32>
    %38 = arith.cmpf oge, %9, %37 : vector<64x128xf32>
    %cst_17 = arith.constant 0.000000e+00 : f32
    %39 = vector.broadcast %cst_17 : f32 to vector<64x128xf32>
    %40 = arith.subf %39, %36 : vector<64x128xf32>
    %41 = arith.select %38, %36, %40 : vector<64x128xi1>, vector<64x128xf32>
    %cst_18 = arith.constant 1.000000e+00 : f32
    %42 = vector.broadcast %cst_18 : f32 to vector<64x128xf32>
    %43 = arith.addf %42, %41 : vector<64x128xf32>
    %44 = arith.mulf %7, %43 : vector<64x128xf32>
    %45 = vector.shape_cast %44 : vector<64x128xf32> to vector<8x8x128xf32>
    %cst_19 = arith.constant dense<0.000000e+00> : vector<8x128xf32>
    %46 = vector.multi_reduction <add>, %45, %cst_19 [1] : vector<8x8x128xf32> to vector<8x128xf32>
    %cst_20 = arith.constant 8.000000e+00 : f32
    %47 = vector.broadcast %cst_20 : f32 to vector<8x128xf32>
    %48 = arith.divf %46, %47 : vector<8x128xf32>
    %49 = arith.mulf %48, %48 : vector<8x128xf32>
    %cst_21 = arith.constant dense<0.000000e+00> : vector<8xf32>
    %50 = vector.multi_reduction <add>, %49, %cst_21 [1] : vector<8x128xf32> to vector<8xf32>
    %51 = vector.shape_cast %50 : vector<8xf32> to vector<8x1xf32>
    %52 = arith.truncf %48 : vector<8x128xf32> to vector<8x128xbf16>
    %c0_22 = arith.constant 0 : index
    %c0_23 = arith.constant 0 : index
    %53 = vector.load %arg4[%c0_22, %c0_23] : memref<128x128xbf16, #tpu.memory_space<vmem>>, vector<128x128xbf16>
    %cst_24 = arith.constant dense<0.000000e+00> : vector<8x128xf32>
    %54 = tpu.matmul %52, %53, %cst_24 {dimension_numbers = #tpu.dot_dimension_numbers<[1], [1], [0], [0], [0, 0, 1, 0], [], []>} : vector<8x128xbf16>, vector<128x128xbf16>, vector<8x128xf32> -> vector<8x128xf32>
    %c0_25 = arith.constant 0 : index
    %c0_26 = arith.constant 0 : index
    %55 = vector.load %arg5[%c0_25, %c0_26] : memref<1x128xf32, #tpu.memory_space<vmem>>, vector<1x128xf32>
    %56 = vector.broadcast %51 : vector<8x1xf32> to vector<8x128xf32>
    %57 = vector.broadcast %55 : vector<1x128xf32> to vector<8x128xf32>
    %58 = arith.addf %56, %57 : vector<8x128xf32>
    %cst_27 = arith.constant 2.000000e+00 : f32
    %59 = vector.broadcast %cst_27 : f32 to vector<8x128xf32>
    %60 = arith.mulf %59, %54 : vector<8x128xf32>
    %61 = arith.subf %58, %60 : vector<8x128xf32>
    %cst_28 = arith.constant 0.000000e+00 : f32
    %62 = vector.broadcast %cst_28 : f32 to vector<8x128xf32>
    %63 = arith.maximumf %61, %62 : vector<8x128xf32>
    %64 = math.sqrt %63 : vector<8x128xf32>
    %cst_29 = arith.constant 0.000000e+00 : f32
    %65 = vector.broadcast %cst_29 : f32 to vector<8x128xf32>
    %66 = arith.subf %65, %64 : vector<8x128xf32>
    %c0_30 = arith.constant 0 : index
    %c0_31 = arith.constant 0 : index
    %67 = vector.load %arg6[%c0_30, %c0_31] : memref<8x128xf32, #tpu.memory_space<vmem>>, vector<8x128xf32>
    tpu.vector_store %arg6[%c0_30, %c0_31], %66 {strides = array<i32>} : memref<8x128xf32, #tpu.memory_space<vmem>>, vector<8x128xf32>,
    return
  }
  func.func @transform_0(%arg0: i32) -> (i32, i32) {
    %c0_i32 = arith.constant 0 : i32
    %c0_i32_0 = arith.constant 0 : i32
    return %arg0, %c0_i32 : i32, i32
  }
  func.func @transform_1(%arg0: i32) -> (i32, i32) {
    %c0_i32 = arith.constant 0 : i32
    %c0_i32_0 = arith.constant 0 : i32
    %c0_i32_1 = arith.constant 0 : i32
    return %c0_i32, %c0_i32_0 : i32, i32
  }
  func.func @transform_2(%arg0: i32) -> (i32, i32) {
    %c0_i32 = arith.constant 0 : i32
    %c0_i32_0 = arith.constant 0 : i32
    %c0_i32_1 = arith.constant 0 : i32
    return %c0_i32, %c0_i32_0 : i32, i32
  }
  func.func @transform_3(%arg0: i32) -> (i32, i32) {
    %c0_i32 = arith.constant 0 : i32
    %c0_i32_0 = arith.constant 0 : i32
    %c0_i32_1 = arith.constant 0 : i32
    return %c0_i32, %c0_i32_0 : i32, i32
  }
  func.func @transform_4(%arg0: i32) -> (i32, i32) {
    %c0_i32 = arith.constant 0 : i32
    %c0_i32_0 = arith.constant 0 : i32
    %c0_i32_1 = arith.constant 0 : i32
    return %c0_i32, %c0_i32_0 : i32, i32
  }
  func.func @transform_5(%arg0: i32) -> (i32, i32) {
    %c0_i32 = arith.constant 0 : i32
    %c0_i32_0 = arith.constant 0 : i32
    return %arg0, %c0_i32 : i32, i32
  }
}

</mosaic_0001>

<llo_original>
// kernel: tpu_custom_call.1
$region0: #{tpu_custom_call.1}
  #allocation0 [shape = 'u32[]', space=smem, size = 0x4, offset = 0x4, fixed_abs, tag = 'smem constant byte address 0x4 - core index']
  #allocation1 [shape = 'u32[144,128]{1,0:T(1,128)}', space=vmem, size = 0x12000, scoped, tag = 'internal scratch']
  %s0 = inlined_call_operand.hbm [shape: bf16[64,128], index: 0, kind: input, shape index: {}]
  %s1 = inlined_call_operand.hbm [shape: bf16[128,128], index: 1, kind: input, shape index: {}]
  %s2 = inlined_call_operand.vmem [shape: f32[1,128], index: 2, kind: input, shape index: {}]
  %s3 = inlined_call_operand.hbm [shape: bf16[128,128], index: 3, kind: input, shape index: {}]
  %s4 = inlined_call_operand.vmem [shape: f32[1,128], index: 4, kind: input, shape index: {}]
  %s5 = inlined_call_operand.hbm [shape: f32[8,128], index: 5, kind: output, shape index: {}]
  %s6 = sld [smem:[#allocation0]]
  $region42: #{tpu_custom_call.1} parent=0
    _
  %s8 = ssub.s32 1, %s6
  %s9 = scalar_select 0, %s8, %s6
  $region1: #{tpu_custom_call.1} parent=0
    #allocation2 [shape = 'u8[16384]{0}', space=vmem, size = 0x4000, scoped, tag = 'input window, operand 0, single buffered']
    #allocation3 [shape = 's32[1]{0}', space=sflag, size = 0x4, scoped, tag = 'scoped memory for tpu_custom_call.1']
    #allocation4 [shape = 's32[1]{0}', space=sflag, size = 0x4, scoped, tag = 'scoped memory for tpu_custom_call.1']
    #allocation5 [shape = 'u8[32768]{0}', space=vmem, size = 0x8000, scoped, tag = 'input window, operand 1, single buffered']
    #allocation6 [shape = 's32[1]{0}', space=sflag, size = 0x4, scoped, tag = 'scoped memory for tpu_custom_call.1']
    #allocation7 [shape = 'u8[32768]{0}', space=vmem, size = 0x8000, scoped, tag = 'input window, operand 3, single buffered']
    #allocation8 [shape = 'u8[4096]{0}', space=vmem, size = 0x1000, scoped, tag = 'output window, operand 0, single buffered']
    %10 = vsyncpa [#allocation3], 0
    %11 = vsyncpa [#allocation6], 0
    %12 = vsyncpa [#allocation4], 0
    // Predicated region
    $region2: #{tpu_custom_call.1} parent=1 // pred_check
      _
    $region3: #{tpu_custom_call.1} parent=1 // pred_check_branch
      %14 = sbr.rel (0) target = $region5
    $region4: #{tpu_custom_call.1} parent=1 // pred_region
      %s16 = ssub.s32 512, 512
      %17 = vsyncadd [#allocation3], %s16
      %s18 = sshll.u32 [#allocation2], 4
      %s19 = int_to_ptr.vmem [resolvable:$true] %s18
      %24 = dma.hbm_to_vmem [thread:$0]  %s0, 512, %s19, [#allocation3], 64, 64, 4
    $region5: #{tpu_custom_call.1} parent=1 // pred_fallthru
      _
    // Predicated region
    $region6: #{tpu_custom_call.1} parent=1 // pred_check
      _
    $region7: #{tpu_custom_call.1} parent=1 // pred_check_branch
      %26 = sbr.rel (0) target = $region9
    $region8: #{tpu_custom_call.1} parent=1 // pred_region
      %s28 = ssub.s32 1024, 1024
      %29 = vsyncadd [#allocation6], %s28
      %s30 = sshll.u32 [#allocation5], 4
      %s31 = int_to_ptr.vmem [resolvable:$true] %s30
      %36 = dma.hbm_to_vmem [thread:$0]  %s1, 1024, %s31, [#allocation6], 64, 64, 4
    $region9: #{tpu_custom_call.1} parent=1 // pred_fallthru
      _
    // Predicated region
    $region10: #{tpu_custom_call.1} parent=1 // pred_check
      _
    $region11: #{tpu_custom_call.1} parent=1 // pred_check_branch
      %38 = sbr.rel (0) target = $region13
    $region12: #{tpu_custom_call.1} parent=1 // pred_region
      _
    $region13: #{tpu_custom_call.1} parent=1 // pred_fallthru
      _
    // Predicated region
    $region14: #{tpu_custom_call.1} parent=1 // pred_check
      _
    $region15: #{tpu_custom_call.1} parent=1 // pred_check_branch
      %40 = sbr.rel (0) target = $region17
    $region16: #{tpu_custom_call.1} parent=1 // pred_region
      %s42 = ssub.s32 1024, 1024
      %43 = vsyncadd [#allocation6], %s42
      %s44 = sshll.u32 [#allocation7], 4
      %s45 = int_to_ptr.vmem [resolvable:$true] %s44
      %50 = dma.hbm_to_vmem [thread:$0]  %s3, 1024, %s45, [#allocation6], 64, 64, 4
    $region17: #{tpu_custom_call.1} parent=1 // pred_fallthru
      _
    // Predicated region
    $region18: #{tpu_custom_call.1} parent=1 // pred_check
      _
    $region19: #{tpu_custom_call.1} parent=1 // pred_check_branch
      %52 = sbr.rel (0) target = $region21
    $region20: #{tpu_custom_call.1} parent=1 // pred_region
      _
    $region21: #{tpu_custom_call.1} parent=1 // pred_fallthru
      _
    // Predicated region
    $region22: #{tpu_custom_call.1} parent=1 // pred_check
      _
    $region23: #{tpu_custom_call.1} parent=1 // pred_check_branch
      %54 = sbr.rel (0) target = $region25
    $region24: #{tpu_custom_call.1} parent=1 // pred_region
      %55 = dma.done [#allocation3], 512
    $region25: #{tpu_custom_call.1} parent=1 // pred_fallthru
      _
    // Predicated region
    $region26: #{tpu_custom_call.1} parent=1 // pred_check
      _
    $region27: #{tpu_custom_call.1} parent=1 // pred_check_branch
      %57 = sbr.rel (0) target = $region29
    $region28: #{tpu_custom_call.1} parent=1 // pred_region
      %58 = dma.done [#allocation6], 1024
    $region29: #{tpu_custom_call.1} parent=1 // pred_fallthru
      _
    // Predicated region
    $region30: #{tpu_custom_call.1} parent=1 // pred_check
      _
    $region31: #{tpu_custom_call.1} parent=1 // pred_check_branch
      %60 = sbr.rel (0) target = $region33
    $region32: #{tpu_custom_call.1} parent=1 // pred_region
      %61 = dma.done [#allocation6], 1024
    $region33: #{tpu_custom_call.1} parent=1 // pred_fallthru
      _
    %v63 = vld [vmem:[#allocation2] sm:$0xf]
    %v64 = vld [vmem:[#allocation2 + $0x4] sm:$0xf]
    %v65 = vld [vmem:[#allocation2 + $0x8] sm:$0xf]
    %v66 = vld [vmem:[#allocation2 + $0xc] sm:$0xf]
    %v67 = vld [vmem:[#allocation2 + $0x10] sm:$0xf]
    %v68 = vld [vmem:[#allocation2 + $0x14] sm:$0xf]
    %v69 = vld [vmem:[#allocation2 + $0x18] sm:$0xf]
    %v70 = vld [vmem:[#allocation2 + $0x1c] sm:$0xf]
    %v71 = vld [vmem:[#allocation5] sm:$0xf]
    %v72 = vld [vmem:[#allocation5 + $0x4] sm:$0xf]
    %v73 = vld [vmem:[#allocation5 + $0x8] sm:$0xf]
    %v74 = vld [vmem:[#allocation5 + $0xc] sm:$0xf]
    %v75 = vld [vmem:[#allocation5 + $0x10] sm:$0xf]
    %v76 = vld [vmem:[#allocation5 + $0x14] sm:$0xf]
    %v77 = vld [vmem:[#allocation5 + $0x18] sm:$0xf]
    %v78 = vld [vmem:[#allocation5 + $0x1c] sm:$0xf]
    %v79 = vld [vmem:[#allocation5 + $0x20] sm:$0xf]
    %v80 = vld [vmem:[#allocation5 + $0x24] sm:$0xf]
    %v81 = vld [vmem:[#allocation5 + $0x28] sm:$0xf]
    %v82 = vld [vmem:[#allocation5 + $0x2c] sm:$0xf]
    %v83 = vld [vmem:[#allocation5 + $0x30] sm:$0xf]
    %v84 = vld [vmem:[#allocation5 + $0x34] sm:$0xf]
    %v85 = vld [vmem:[#allocation5 + $0x38] sm:$0xf]
    %v86 = vld [vmem:[#allocation5 + $0x3c] sm:$0xf]
    %v87 = vld [vmem:[%s2] sm:$0x1]
    %v89 = vlaneseq
    %v90 = vshrl.u32 %v89, 7
    %v91 = vsub.s32 0, %v90
    %v92 = vrot.slane %v87, %v91
    %v102 = vunpack.c.l.b16 %v63
    %v103 = vunpack.c.l.b16 %v64
    %v104 = vunpack.c.l.b16 %v65
    %v105 = vunpack.c.l.b16 %v66
    %v106 = vunpack.c.l.b16 %v67
    %v107 = vunpack.c.l.b16 %v68
    %v108 = vunpack.c.l.b16 %v69
    %v109 = vunpack.c.l.b16 %v70
    %v110 = vpack.c.b16 %v103, %v102
    %v111 = vpack.c.b16 %v105, %v104
    %v112 = vpack.c.b16 %v107, %v106
    %v113 = vpack.c.b16 %v109, %v108
    %v134 = vunpack.c.l.b16 %v71
    %v135 = vunpack.c.l.b16 %v72
    %v136 = vunpack.c.l.b16 %v73
    %v137 = vunpack.c.l.b16 %v74
    %v138 = vunpack.c.l.b16 %v75
    %v139 = vunpack.c.l.b16 %v76
    %v140 = vunpack.c.l.b16 %v77
    %v141 = vunpack.c.l.b16 %v78
    %v142 = vunpack.c.l.b16 %v79
    %v143 = vunpack.c.l.b16 %v80
    %v144 = vunpack.c.l.b16 %v81
    %v145 = vunpack.c.l.b16 %v82
    %v146 = vunpack.c.l.b16 %v83
    %v147 = vunpack.c.l.b16 %v84
    %v148 = vunpack.c.l.b16 %v85
    %v149 = vunpack.c.l.b16 %v86
    %v150 = vpack.c.b16 %v135, %v134
    %v151 = vpack.c.b16 %v137, %v136
    %v152 = vpack.c.b16 %v139, %v138
    %v153 = vpack.c.b16 %v141, %v140
    %v154 = vpack.c.b16 %v143, %v142
    %v155 = vpack.c.b16 %v145, %v144
    %v156 = vpack.c.b16 %v147, %v146
    %v157 = vpack.c.b16 %v149, %v148
    %166 = vmatprep.subr.bf16.mxu0 0
    %167 = vmatpush1.bf16.msra.mxu0 %v150
    %168 = vmatprep.subr.bf16.mxu0 0
    %169 = vmatpush1.bf16.msra.mxu0 %v151
    %170 = vmatprep.subr.bf16.mxu0 0
    %171 = vmatpush1.bf16.msra.mxu0 %v152
    %172 = vmatprep.subr.bf16.mxu0 0
    %173 = vmatpush1.bf16.msra.mxu0 %v153
    %174 = vmatprep.subr.bf16.mxu0 0
    %175 = vmatpush1.bf16.msra.mxu0 %v154
    %176 = vmatprep.subr.bf16.mxu0 0
    %177 = vmatpush1.bf16.msra.mxu0 %v155
    %178 = vmatprep.subr.bf16.mxu0 0
    %179 = vmatpush1.bf16.msra.mxu0 %v156
    %180 = vmatprep.subr.bf16.mxu0 0
    %181 = vmatpush1.bf16.msra.mxu0 %v157
    %182 = vmatprep.subr.bf16.mxu0 0
    %183 = vmatpush1.bf16.msra.mxu0 0
    %184 = vmatprep.subr.bf16.mxu0 0
    %185 = vmatpush1.bf16.msra.mxu0 0
    %186 = vmatprep.subr.bf16.mxu0 0
    %187 = vmatpush1.bf16.msra.mxu0 0
    %188 = vmatprep.subr.bf16.mxu0 0
    %189 = vmatpush1.bf16.msra.mxu0 0
    %190 = vmatprep.subr.bf16.mxu0 0
    %191 = vmatpush1.bf16.msra.mxu0 0
    %192 = vmatprep.subr.bf16.mxu0 0
    %193 = vmatpush1.bf16.msra.mxu0 0
    %194 = vmatprep.subr.bf16.mxu0 0
    %195 = vmatpush1.bf16.msra.mxu0 0
    %196 = vmatprep.subr.bf16.mxu0 0
    %197 = vmatpush1.bf16.msra.mxu0 0
    %198 = vmatprep.mubr.bf16.mxu0 0
    %199 = vmatmul.mubr.bf16.gmra.mrb[0].mxu0 %v110
    %v200 = vpop.f32.mrb[0].mxu0
    %v201 = vadd.f32 %v92, %v200
    %v202 = vpop.f32.mrb[0].mxu0
    %v203 = vpop.f32.mrb[0].mxu0
    %v204 = vadd.f32 %v92, %v203
    %v205 = vpop.f32.mrb[0].mxu0
    %206 = vmatprep.mubr.bf16.mxu0 0
    %207 = vmatmul.mubr.bf16.gmra.mrb[0].mxu0 %v111
    %v208 = vpop.f32.mrb[0].mxu0
    %v209 = vadd.f32 %v92, %v208
    %v210 = vpop.f32.mrb[0].mxu0
    %v211 = vpop.f32.mrb[0].mxu0
    %v212 = vadd.f32 %v92, %v211
    %v213 = vpop.f32.mrb[0].mxu0
    %214 = vmatprep.mubr.bf16.mxu0 0
    %215 = vmatmul.mubr.bf16.gmra.mrb[0].mxu0 %v112
    %v216 = vpop.f32.mrb[0].mxu0
    %v217 = vadd.f32 %v92, %v216
    %v218 = vpop.f32.mrb[0].mxu0
    %v219 = vpop.f32.mrb[0].mxu0
    %v220 = vadd.f32 %v92, %v219
    %v221 = vpop.f32.mrb[0].mxu0
    %222 = vmatprep.mubr.bf16.mxu0 0
    %223 = vmatmul.mubr.bf16.gmra.mrb[0].mxu0 %v113
    %v224 = vpop.f32.mrb[0].mxu0
    %v225 = vadd.f32 %v92, %v224
    %v226 = vpop.f32.mrb[0].mxu0
    %v227 = vpop.f32.mrb[0].mxu0
    %v228 = vadd.f32 %v92, %v227
    %v229 = vpop.f32.mrb[0].mxu0
    %230 = vdwg.mxu0
    %v231 = vmul.f32 %v201, 0.5
    %v232 = vmul.f32 %v204, 0.5
    %v233 = vmul.f32 %v209, 0.5
    %v234 = vmul.f32 %v212, 0.5
    %v235 = vmul.f32 %v217, 0.5
    %v236 = vmul.f32 %v220, 0.5
    %v237 = vmul.f32 %v225, 0.5
    %v238 = vmul.f32 %v228, 0.5
    %v239 = vmul.f32 %v201, 0.70710677
    %v240 = vmul.f32 %v204, 0.70710677
    %v241 = vmul.f32 %v209, 0.70710677
    %v242 = vmul.f32 %v212, 0.70710677
    %v243 = vmul.f32 %v217, 0.70710677
    %v244 = vmul.f32 %v220, 0.70710677
    %v245 = vmul.f32 %v225, 0.70710677
    %v246 = vmul.f32 %v228, 0.70710677
    %v247 = vand.u32 2147483647, %v239
    %v248 = vand.u32 2147483647, %v240
    %v249 = vand.u32 2147483647, %v241
    %v250 = vand.u32 2147483647, %v242
    %v251 = vand.u32 2147483647, %v243
    %v252 = vand.u32 2147483647, %v244
    %v253 = vand.u32 2147483647, %v245
    %v254 = vand.u32 2147483647, %v246
    %v255 = vmul.f32 %v247, 0.3275911
    %v256 = vmul.f32 %v248, 0.3275911
    %v257 = vmul.f32 %v249, 0.3275911
    %v258 = vmul.f32 %v250, 0.3275911
    %v259 = vmul.f32 %v251, 0.3275911
    %v260 = vmul.f32 %v252, 0.3275911
    %v261 = vmul.f32 %v253, 0.3275911
    %v262 = vmul.f32 %v254, 0.3275911
    %v263 = vadd.f32 %v255, 1.0
    %v264 = vadd.f32 %v256, 1.0
    %v265 = vadd.f32 %v257, 1.0
    %v266 = vadd.f32 %v258, 1.0
    %v267 = vadd.f32 %v259, 1.0
    %v268 = vadd.f32 %v260, 1.0
    %v269 = vadd.f32 %v261, 1.0
    %v270 = vadd.f32 %v262, 1.0
    %v271 = vrcp.pop %v263
    %v272 = vrcp.pop %v264
    %v273 = vrcp.pop %v265
    %v274 = vrcp.pop %v266
    %v275 = vrcp.pop %v267
    %v276 = vrcp.pop %v268
    %v277 = vrcp.pop %v269
    %v278 = vrcp.pop %v270
    %v279 = vmul.f32 %v271, 1.0614054
    %v280 = vmul.f32 %v272, 1.0614054
    %v281 = vmul.f32 %v273, 1.0614054
    %v282 = vmul.f32 %v274, 1.0614054
    %v283 = vmul.f32 %v275, 1.0614054
    %v284 = vmul.f32 %v276, 1.0614054
    %v285 = vmul.f32 %v277, 1.0614054
    %v286 = vmul.f32 %v278, 1.0614054
    %v287 = vadd.f32 %v279, -1.4531521
    %v288 = vadd.f32 %v280, -1.4531521
    %v289 = vadd.f32 %v281, -1.4531521
    %v290 = vadd.f32 %v282, -1.4531521
    %v291 = vadd.f32 %v283, -1.4531521
    %v292 = vadd.f32 %v284, -1.4531521
    %v293 = vadd.f32 %v285, -1.4531521
    %v294 = vadd.f32 %v286, -1.4531521
    %v295 = vmul.f32 %v287, %v271
    %v296 = vmul.f32 %v288, %v272
    %v297 = vmul.f32 %v289, %v273
    %v298 = vmul.f32 %v290, %v274
    %v299 = vmul.f32 %v291, %v275
    %v300 = vmul.f32 %v292, %v276
    %v301 = vmul.f32 %v293, %v277
    %v302 = vmul.f32 %v294, %v278
    %v303 = vadd.f32 %v295, 1.4214138
    %v304 = vadd.f32 %v296, 1.4214138
    %v305 = vadd.f32 %v297, 1.4214138
    %v306 = vadd.f32 %v298, 1.4214138
    %v307 = vadd.f32 %v299, 1.4214138
    %v308 = vadd.f32 %v300, 1.4214138
    %v309 = vadd.f32 %v301, 1.4214138
    %v310 = vadd.f32 %v302, 1.4214138
    %v311 = vmul.f32 %v303, %v271
    %v312 = vmul.f32 %v304, %v272
    %v313 = vmul.f32 %v305, %v273
    %v314 = vmul.f32 %v306, %v274
    %v315 = vmul.f32 %v307, %v275
    %v316 = vmul.f32 %v308, %v276
    %v317 = vmul.f32 %v309, %v277
    %v318 = vmul.f32 %v310, %v278
    %v319 = vadd.f32 %v311, -0.28449672
    %v320 = vadd.f32 %v312, -0.28449672
    %v321 = vadd.f32 %v313, -0.28449672
    %v322 = vadd.f32 %v314, -0.28449672
    %v323 = vadd.f32 %v315, -0.28449672
    %v324 = vadd.f32 %v316, -0.28449672
    %v325 = vadd.f32 %v317, -0.28449672
    %v326 = vadd.f32 %v318, -0.28449672
    %v327 = vmul.f32 %v319, %v271
    %v328 = vmul.f32 %v320, %v272
    %v329 = vmul.f32 %v321, %v273
    %v330 = vmul.f32 %v322, %v274
    %v331 = vmul.f32 %v323, %v275
    %v332 = vmul.f32 %v324, %v276
    %v333 = vmul.f32 %v325, %v277
    %v334 = vmul.f32 %v326, %v278
    %v335 = vadd.f32 %v327, 0.2548296
    %v336 = vadd.f32 %v328, 0.2548296
    %v337 = vadd.f32 %v329, 0.2548296
    %v338 = vadd.f32 %v330, 0.2548296
    %v339 = vadd.f32 %v331, 0.2548296
    %v340 = vadd.f32 %v332, 0.2548296
    %v341 = vadd.f32 %v333, 0.2548296
    %v342 = vadd.f32 %v334, 0.2548296
    %v343 = vmul.f32 %v335, %v271
    %v344 = vmul.f32 %v336, %v272
    %v345 = vmul.f32 %v337, %v273
    %v346 = vmul.f32 %v338, %v274
    %v347 = vmul.f32 %v339, %v275
    %v348 = vmul.f32 %v340, %v276
    %v349 = vmul.f32 %v341, %v277
    %v350 = vmul.f32 %v342, %v278
    %v351 = vmul.f32 %v247, %v247
    %v352 = vmul.f32 %v248, %v248
    %v353 = vmul.f32 %v249, %v249
    %v354 = vmul.f32 %v250, %v250
    %v355 = vmul.f32 %v251, %v251
    %v356 = vmul.f32 %v252, %v252
    %v357 = vmul.f32 %v253, %v253
    %v358 = vmul.f32 %v254, %v254
    %v359 = vsub.f32 0.0, %v351
    %v360 = vsub.f32 0.0, %v352
    %v361 = vsub.f32 0.0, %v353
    %v362 = vsub.f32 0.0, %v354
    %v363 = vsub.f32 0.0, %v355
    %v364 = vsub.f32 0.0, %v356
    %v365 = vsub.f32 0.0, %v357
    %v366 = vsub.f32 0.0, %v358
    %v367 = vmul.f32 %v359, 1.442695
    %v368 = vpow.pop %v367
    %v369 = vmul.f32 %v360, 1.442695
    %v370 = vpow.pop %v369
    %v371 = vmul.f32 %v361, 1.442695
    %v372 = vpow.pop %v371
    %v373 = vmul.f32 %v362, 1.442695
    %v374 = vpow.pop %v373
    %v375 = vmul.f32 %v363, 1.442695
    %v376 = vpow.pop %v375
    %v377 = vmul.f32 %v364, 1.442695
    %v378 = vpow.pop %v377
    %v379 = vmul.f32 %v365, 1.442695
    %v380 = vpow.pop %v379
    %v381 = vmul.f32 %v366, 1.442695
    %v382 = vpow.pop %v381
    %v383 = vmul.f32 %v343, %v368
    %v384 = vmul.f32 %v344, %v370
    %v385 = vmul.f32 %v345, %v372
    %v386 = vmul.f32 %v346, %v374
    %v387 = vmul.f32 %v347, %v376
    %v388 = vmul.f32 %v348, %v378
    %v389 = vmul.f32 %v349, %v380
    %v390 = vmul.f32 %v350, %v382
    %v391 = vsub.f32 1.0, %v383
    %v392 = vsub.f32 1.0, %v384
    %v393 = vsub.f32 1.0, %v385
    %v394 = vsub.f32 1.0, %v386
    %v395 = vsub.f32 1.0, %v387
    %v396 = vsub.f32 1.0, %v388
    %v397 = vsub.f32 1.0, %v389
    %v398 = vsub.f32 1.0, %v390
    %vm399 = vcmp.ge.f32.partialorder %v239, 0.0
    %vm400 = vcmp.ge.f32.partialorder %v240, 0.0
    %vm401 = vcmp.ge.f32.partialorder %v241, 0.0
    %vm402 = vcmp.ge.f32.partialorder %v242, 0.0
    %vm403 = vcmp.ge.f32.partialorder %v243, 0.0
    %vm404 = vcmp.ge.f32.partialorder %v244, 0.0
    %vm405 = vcmp.ge.f32.partialorder %v245, 0.0
    %vm406 = vcmp.ge.f32.partialorder %v246, 0.0
    %v407 = vsub.f32 0.0, %v391
    %v408 = vsub.f32 0.0, %v392
    %v409 = vsub.f32 0.0, %v393
    %v410 = vsub.f32 0.0, %v394
    %v411 = vsub.f32 0.0, %v395
    %v412 = vsub.f32 0.0, %v396
    %v413 = vsub.f32 0.0, %v397
    %v414 = vsub.f32 0.0, %v398
    %v415 = vsel %vm399, %v391, %v407
    %v416 = vsel %vm400, %v392, %v408
    %v417 = vsel %vm401, %v393, %v409
    %v418 = vsel %vm402, %v394, %v410
    %v419 = vsel %vm403, %v395, %v411
    %v420 = vsel %vm404, %v396, %v412
    %v421 = vsel %vm405, %v397, %v413
    %v422 = vsel %vm406, %v398, %v414
    %v423 = vadd.f32 %v415, 1.0
    %v424 = vadd.f32 %v416, 1.0
    %v425 = vadd.f32 %v417, 1.0
    %v426 = vadd.f32 %v418, 1.0
    %v427 = vadd.f32 %v419, 1.0
    %v428 = vadd.f32 %v420, 1.0
    %v429 = vadd.f32 %v421, 1.0
    %v430 = vadd.f32 %v422, 1.0
    %v431 = vmul.f32 %v231, %v423
    %v432 = vmul.f32 %v232, %v424
    %v433 = vmul.f32 %v233, %v425
    %v434 = vmul.f32 %v234, %v426
    %v435 = vmul.f32 %v235, %v427
    %v436 = vmul.f32 %v236, %v428
    %v437 = vmul.f32 %v237, %v429
    %v438 = vmul.f32 %v238, %v430
    %v439 = vrot.slane %v431, 4
    %v440 = vadd.f32 %v431, %v439
    %v441 = vrot.slane %v440, 2
    %v442 = vadd.f32 %v440, %v441
    %v443 = vrot.slane %v442, 1
    %v444 = vadd.f32 %v442, %v443
    %v445 = vrot.slane %v432, 4
    %v446 = vadd.f32 %v432, %v445
    %v447 = vrot.slane %v446, 2
    %v448 = vadd.f32 %v446, %v447
    %v449 = vrot.slane %v448, 1
    %v450 = vadd.f32 %v448, %v449
    %v451 = vrot.slane %v433, 4
    %v452 = vadd.f32 %v433, %v451
    %v453 = vrot.slane %v452, 2
    %v454 = vadd.f32 %v452, %v453
    %v455 = vrot.slane %v454, 1
    %v456 = vadd.f32 %v454, %v455
    %v457 = vrot.slane %v434, 4
    %v458 = vadd.f32 %v434, %v457
    %v459 = vrot.slane %v458, 2
    %v460 = vadd.f32 %v458, %v459
    %v461 = vrot.slane %v460, 1
    %v462 = vadd.f32 %v460, %v461
    %v463 = vrot.slane %v435, 4
    %v464 = vadd.f32 %v435, %v463
    %v465 = vrot.slane %v464, 2
    %v466 = vadd.f32 %v464, %v465
    %v467 = vrot.slane %v466, 1
    %v468 = vadd.f32 %v466, %v467
    %v469 = vrot.slane %v436, 4
    %v470 = vadd.f32 %v436, %v469
    %v471 = vrot.slane %v470, 2
    %v472 = vadd.f32 %v470, %v471
    %v473 = vrot.slane %v472, 1
    %v474 = vadd.f32 %v472, %v473
    %v475 = vrot.slane %v437, 4
    %v476 = vadd.f32 %v437, %v475
    %v477 = vrot.slane %v476, 2
    %v478 = vadd.f32 %v476, %v477
    %v479 = vrot.slane %v478, 1
    %v480 = vadd.f32 %v478, %v479
    %v481 = vrot.slane %v438, 4
    %v482 = vadd.f32 %v438, %v481
    %v483 = vrot.slane %v482, 2
    %v484 = vadd.f32 %v482, %v483
    %v485 = vrot.slane %v484, 1
    %v486 = vadd.f32 %v484, %v485
    %v487 = vrcp.pop 8.0
    %v488 = vmul.f32 %v444, %v487
    %v489 = vmul.f32 %v450, %v487
    %v490 = vmul.f32 %v456, %v487
    %v491 = vmul.f32 %v462, %v487
    %v492 = vmul.f32 %v468, %v487
    %v493 = vmul.f32 %v474, %v487
    %v494 = vmul.f32 %v480, %v487
    %v495 = vmul.f32 %v486, %v487
    %v496 = vmul.f32 %v488, %v488
    %v497 = vmul.f32 %v489, %v489
    %v498 = vmul.f32 %v490, %v490
    %v499 = vmul.f32 %v491, %v491
    %v500 = vmul.f32 %v492, %v492
    %v501 = vmul.f32 %v493, %v493
    %v502 = vmul.f32 %v494, %v494
    %v503 = vmul.f32 %v495, %v495
    %vm512 = vcmask 1041409
    %v513 = vsel %vm512, %v497, %v496
    %vm514 = vcmask 1042434
    %v515 = vsel %vm514, %v498, %v513
    %vm516 = vcmask 1043459
    %v517 = vsel %vm516, %v499, %v515
    %vm518 = vcmask 1044484
    %v519 = vsel %vm518, %v500, %v517
    %vm520 = vcmask 1045509
    %v521 = vsel %vm520, %v501, %v519
    %vm522 = vcmask 1046534
    %v523 = vsel %vm522, %v502, %v521
    %vm524 = vcmask 1047559
    %v525 = vsel %vm524, %v503, %v523
    %527 = vadd.xlane.f32.xlu0 %v525
    %v528 = vpop.xlane.xlu0 %527
    %v529 = vpack.c.bf16 %v488, %v488
    %v530 = vpack.c.bf16 %v489, %v489
    %v531 = vpack.c.bf16 %v490, %v490
    %v532 = vpack.c.bf16 %v491, %v491
    %v533 = vpack.c.bf16 %v492, %v492
    %v534 = vpack.c.bf16 %v493, %v493
    %v535 = vpack.c.bf16 %v494, %v494
    %v536 = vpack.c.bf16 %v495, %v495
    %v537 = vld [vmem:[#allocation7] sm:$0xf]
    %v538 = vld [vmem:[#allocation7 + $0x4] sm:$0xf]
    %v539 = vld [vmem:[#allocation7 + $0x8] sm:$0xf]
    %v540 = vld [vmem:[#allocation7 + $0xc] sm:$0xf]
    %v541 = vld [vmem:[#allocation7 + $0x10] sm:$0xf]
    %v542 = vld [vmem:[#allocation7 + $0x14] sm:$0xf]
    %v543 = vld [vmem:[#allocation7 + $0x18] sm:$0xf]
    %v544 = vld [vmem:[#allocation7 + $0x1c] sm:$0xf]
    %v545 = vld [vmem:[#allocation7 + $0x20] sm:$0xf]
    %v546 = vld [vmem:[#allocation7 + $0x24] sm:$0xf]
    %v547 = vld [vmem:[#allocation7 + $0x28] sm:$0xf]
    %v548 = vld [vmem:[#allocation7 + $0x2c] sm:$0xf]
    %v549 = vld [vmem:[#allocation7 + $0x30] sm:$0xf]
    %v550 = vld [vmem:[#allocation7 + $0x34] sm:$0xf]
    %v551 = vld [vmem:[#allocation7 + $0x38] sm:$0xf]
    %v552 = vld [vmem:[#allocation7 + $0x3c] sm:$0xf]
    %v561 = vunpack.c.l.b16 %v529
    %v562 = vunpack.c.l.b16 %v530
    %v563 = vunpack.c.l.b16 %v531
    %v564 = vunpack.c.l.b16 %v532
    %v565 = vunpack.c.l.b16 %v533
    %v566 = vunpack.c.l.b16 %v534
    %v567 = vunpack.c.l.b16 %v535
    %v568 = vunpack.c.l.b16 %v536
    %v569 = vsel %vm512, %v562, %v561
    %v570 = vsel %vm514, %v563, %v569
    %v571 = vsel %vm516, %v564, %v570
    %v572 = vsel %vm518, %v565, %v571
    %v573 = vsel %vm520, %v566, %v572
    %v574 = vsel %vm522, %v567, %v573
    %v575 = vsel %vm524, %v568, %v574
    %v576 = vpack.c.b16 %v575, %v575
    %v594 = vunpack.c.l.b16 %v537
    %v595 = vunpack.c.l.b16 %v538
    %v596 = vunpack.c.l.b16 %v539
    %v597 = vunpack.c.l.b16 %v540
    %v598 = vunpack.c.l.b16 %v541
    %v599 = vunpack.c.l.b16 %v542
    %v600 = vunpack.c.l.b16 %v543
    %v601 = vunpack.c.l.b16 %v544
    %v602 = vunpack.c.l.b16 %v545
    %v603 = vunpack.c.l.b16 %v546
    %v604 = vunpack.c.l.b16 %v547
    %v605 = vunpack.c.l.b16 %v548
    %v606 = vunpack.c.l.b16 %v549
    %v607 = vunpack.c.l.b16 %v550
    %v608 = vunpack.c.l.b16 %v551
    %v609 = vunpack.c.l.b16 %v552
    %v610 = vpack.c.b16 %v595, %v594
    %v611 = vpack.c.b16 %v597, %v596
    %v612 = vpack.c.b16 %v599, %v598
    %v613 = vpack.c.b16 %v601, %v600
    %v614 = vpack.c.b16 %v603, %v602
    %v615 = vpack.c.b16 %v605, %v604
    %v616 = vpack.c.b16 %v607, %v606
    %v617 = vpack.c.b16 %v609, %v608
    %626 = vmatprep.subr.bf16.mxu0 0
    %627 = vmatpush1.bf16.xpose.msra.mxu0 %v610
    %628 = vmatprep.subr.bf16.mxu0 0
    %629 = vmatpush1.bf16.xpose.msra.mxu0 %v611
    %630 = vmatprep.subr.bf16.mxu0 0
    %631 = vmatpush1.bf16.xpose.msra.mxu0 %v612
    %632 = vmatprep.subr.bf16.mxu0 0
    %633 = vmatpush1.bf16.xpose.msra.mxu0 %v613
    %634 = vmatprep.subr.bf16.mxu0 0
    %635 = vmatpush1.bf16.xpose.msra.mxu0 %v614
    %636 = vmatprep.subr.bf16.mxu0 0
    %637 = vmatpush1.bf16.xpose.msra.mxu0 %v615
    %638 = vmatprep.subr.bf16.mxu0 0
    %639 = vmatpush1.bf16.xpose.msra.mxu0 %v616
    %640 = vmatprep.subr.bf16.mxu0 0
    %641 = vmatpush1.bf16.xpose.msra.mxu0 %v617
    %642 = vmatprep.subr.bf16.mxu0 0
    %643 = vmatpush1.bf16.xpose.msra.mxu0 0
    %644 = vmatprep.subr.bf16.mxu0 0
    %645 = vmatpush1.bf16.xpose.msra.mxu0 0
    %646 = vmatprep.subr.bf16.mxu0 0
    %647 = vmatpush1.bf16.xpose.msra.mxu0 0
    %648 = vmatprep.subr.bf16.mxu0 0
    %649 = vmatpush1.bf16.xpose.msra.mxu0 0
    %650 = vmatprep.subr.bf16.mxu0 0
    %651 = vmatpush1.bf16.xpose.msra.mxu0 0
    %652 = vmatprep.subr.bf16.mxu0 0
    %653 = vmatpush1.bf16.xpose.msra.mxu0 0
    %654 = vmatprep.subr.bf16.mxu0 0
    %655 = vmatpush1.bf16.xpose.msra.mxu0 0
    %656 = vmatprep.subr.bf16.mxu0 0
    %657 = vmatpush1.bf16.xpose.msra.mxu0 0
    %658 = vmatprep.mubr.bf16.mxu0 0
    %659 = vmatmul.mubr.bf16.gmra.mrb[0].mxu0 %v576
    %v660 = vpop.f32.mrb[0].mxu0
    %v661 = vadd.f32 0.0, %v660
    %v662 = vpop.f32.mrb[0].mxu0
    %v663 = vpop.f32.mrb[0].mxu0
    %v664 = vpop.f32.mrb[0].mxu0
    %665 = vdwg.mxu0
    %v666 = vld [vmem:[%s4] sm:$0x1]
    %v668 = vlaneseq
    %v669 = vshrl.u32 %v668, 7
    %v670 = vsub.s32 0, %v669
    %v671 = vrot.slane %v666, %v670
    %v673 = vadd.f32 %v528, %v671
    %v674 = vmul.f32 %v661, 2.0
    %v675 = vsub.f32 %v673, %v674
    %v676 = vmax.f32 %v675, 0.0
    %v677 = vrsqrt.pop %v676
    %v678 = vmul.f32 %v676, %v677
    %vm679 = vcmp.eq.f32.partialorder %v676, inf
    %v680 = vsel %vm679, %v676, %v678
    %vm681 = vcmp.eq.f32.partialorder %v676, 0.0
    %v682 = vand.u32 %v676, 2147483648
    %v683 = vsel %vm681, %v682, %v680
    %v684 = vsub.f32 0.0, %v683
    %685 = vst [vmem:[#allocation8] sm:$0xff] %v684
    // Predicated region
    $region34: #{tpu_custom_call.1} parent=1 // pred_check
      _
    $region35: #{tpu_custom_call.1} parent=1 // pred_check_branch
      %687 = sbr.rel (0) target = $region37
    $region36: #{tpu_custom_call.1} parent=1 // pred_region
      %s689 = ssub.s32 128, 128
      %690 = vsyncadd [#allocation4], %s689
      %s692 = sshll.u32 [#allocation8], 4
      %s693 = int_to_ptr.vmem [resolvable:$true] %s692
      %695 = dma.vmem_to_hbm [thread:$0]  %s693, 128, %s5, [#allocation4]
    $region37: #{tpu_custom_call.1} parent=1 // pred_fallthru
      _
    // Predicated region
    $region38: #{tpu_custom_call.1} parent=1 // pred_check
      _
    $region39: #{tpu_custom_call.1} parent=1 // pred_check_branch
      %697 = sbr.rel (0) target = $region41
    $region40: #{tpu_custom_call.1} parent=1 // pred_region
      %698 = dma.done [#allocation4], 128
    $region41: #{tpu_custom_call.1} parent=1 // pred_fallthru
      _
    %699 = vsyncpa [#allocation3], 1
    %700 = vsyncpa [#allocation6], 1
    %701 = vsyncpa [#allocation4], 1

</llo_original>
